<compile_context>
chip_gen: v7x
topology: tpu7x:2x2x1
jax: 0.10.0
libtpu: 0.0.40
codegen_flags: <defaults>
</compile_context>

<pallas_src>
import functools

import jax
import jax.numpy as jnp
from jax.experimental import pallas as pl
from jax.experimental.pallas import tpu as pltpu


def _dice_loss_kernel(x_ref, t_ref, out_ref, *, total_n, tile_n):
    i = pl.program_id(0)

    x = x_ref[...].astype(jnp.float32)                     # (tile_n, C) logits
    t = t_ref[...]                                         # (tile_n, 1) int32 indices

    # Valid-row mask: handles the partial edge block / padded rows (no host pad of [N,C]).
    row = jax.lax.broadcasted_iota(jnp.int32, (tile_n, 1), 0) + i * tile_n
    valid = row < total_n

    # Row-wise softmax pieces.  Gather the target logit via a masked max
    # (no f32 one-hot, no extra full-block multiply).
    col = jax.lax.broadcasted_iota(jnp.int32, x.shape, 1)
    m = jnp.max(x, axis=1, keepdims=True)                  # (tile_n, 1)
    e = jnp.exp(x - m)
    z = jnp.sum(e, axis=1, keepdims=True)                  # softmax denominator
    x_t = jnp.max(jnp.where(col == t, x, -jnp.inf), axis=1, keepdims=True)
    num = jnp.exp(x_t - m)                                 # softmax numerator at target

    # dsc = 1 - (1-p)p/((1-p)p+1) == 1/((1-p)p+1); with p = num/z and s = z - num:
    #   dsc = z^2 / (s*num + z^2)  -> one exact reciprocal per row (vs two before).
    s = z - num
    z2 = z * z
    dsc = z2 * pl.reciprocal(s * num + z2, approx=False)
    dsc = jnp.where(valid, dsc, 0.0)                       # zero padded / out-of-range rows

    # (8,128)-aligned lane-dense per-block partial sum; final reduce in the wrapper.
    out_ref[...] = jnp.full((8, 128), jnp.sum(dsc), dtype=jnp.float32)


def _choose_tile_n(n_rows, c, *, target_block_bytes=2 << 20):
    """Rows per block, sized so the lane-padded f32 logits block is ~target bytes."""
    c_pad = ((c + 127) // 128) * 128
    tile_n = max(8, (target_block_bytes // (c_pad * 4)) // 8 * 8)
    # Prefer >= 4 blocks (>= 2 minimum) when N allows it: the "parallel" grid axis
    # shards across both v7x TensorCores and load-balances.
    if n_rows >= 4 * 8:
        tile_n = min(tile_n, max(8, (n_rows // 4) // 8 * 8))
    elif n_rows >= 2 * 8:
        tile_n = min(tile_n, 8)
    # Keep the block within the array along rows (edge block may still be partial).
    tile_n = min(tile_n, (n_rows // 8) * 8)
    return max(8, tile_n)


def _vmem_limit_bytes(tile_n, c, itemsize):
    """Honest scoped-VMEM budget: pipelined input blocks + in-kernel temporaries."""
    c_pad = ((c + 127) // 128) * 128
    in_blocks = 2 * tile_n * (c_pad * itemsize + 128 * 4)  # double-buffered logits + targets
    temps = 6 * tile_n * c_pad * 4                         # full-block f32/i32 temporaries
    out_blocks = 2 * 8 * 128 * 4
    return int(max(16 << 20, in_blocks + temps + out_blocks + (2 << 20)))


def dice_loss(inputs, target, *, tile_n=None, reduction="mean"):
    """inputs: [N, C] float; target: [N] int.  Returns the scalar mean dice loss."""
    assert reduction == "mean", "only the module default ('mean') is implemented in-kernel"
    n, c = inputs.shape
    t2d = target.astype(jnp.int32).reshape(n, 1)

    # Only a tiny (<8 row) pad when N is below one sublane granule; otherwise the
    # kernel's validity mask handles the ragged edge block with zero extra HBM traffic.
    n_rows = n
    if n < 8:
        inputs = jnp.pad(inputs, ((0, 8 - n), (0, 0)))
        t2d = jnp.pad(t2d, ((0, 8 - n), (0, 0)))
        n_rows = 8

    itemsize = jnp.dtype(inputs.dtype).itemsize
    if tile_n is None:
        tile_n = _choose_tile_n(n_rows, c)
    num_blocks = pl.cdiv(n_rows, tile_n)

    kernel = functools.partial(_dice_loss_kernel, total_n=n, tile_n=tile_n)
    partial_sums = pl.pallas_call(
        kernel,
        out_shape=jax.ShapeDtypeStruct((num_blocks * 8, 128), jnp.float32),
        grid_spec=pltpu.PrefetchScalarGridSpec(
            num_scalar_prefetch=0,
            grid=(num_blocks,),
            in_specs=[
                pl.BlockSpec((tile_n, c), lambda i: (i, 0)),
                pl.BlockSpec((tile_n, 1), lambda i: (i, 0)),
            ],
            out_specs=pl.BlockSpec((8, 128), lambda i: (i, 0)),
        ),
        compiler_params=pltpu.CompilerParams(
            # No cross-block state: the grid axis shards across TensorCores (v7x).
            dimension_semantics=("parallel",),
            vmem_limit_bytes=_vmem_limit_bytes(tile_n, c, itemsize),
        ),
    )(inputs, t2d)

    # Final reduction over per-block partial sums; mean over the true N.
    block_sums = partial_sums.reshape(num_blocks, 8, 128)[:, 0, 0]
    return jnp.sum(block_sums) / jnp.float32(n)


def _dice_loss_ref(inputs, target):
    prob = jax.nn.softmax(inputs.astype(jnp.float32), axis=1)
    p = jnp.take_along_axis(prob, target[:, None].astype(jnp.int32), axis=1)
    dsc = 1.0 - (1.0 - p) * p / ((1.0 - p) * p + 1.0)
    return jnp.mean(dsc)


if __name__ == "__main__":
    key = jax.random.PRNGKey(0)
    k1, k2 = jax.random.split(key)
    N, C = 16, 32
    inputs = jax.random.normal(k1, (N, C), dtype=jnp.float32)
    target = jax.random.randint(k2, (N,), 0, C, dtype=jnp.int32)

    loss = jax.block_until_ready(dice_loss(inputs, target))
    ref = _dice_loss_ref(inputs, target)
    assert jnp.allclose(loss, ref, atol=1e-5, rtol=1e-5), (loss, ref)

    # Ragged N (exercises the partial edge block + in-kernel row-validity mask).
    N2 = 13
    inputs2 = jax.random.normal(k1, (N2, C), dtype=jnp.float32)
    target2 = jax.random.randint(k2, (N2,), 0, C, dtype=jnp.int32)
    loss2 = jax.block_until_ready(dice_loss(inputs2, target2))
    ref2 = _dice_loss_ref(inputs2, target2)
    assert jnp.allclose(loss2, ref2, atol=1e-5, rtol=1e-5), (loss2, ref2)

    # Tiny N (< one sublane granule; exercises the minimal pad path).
    N3 = 5
    inputs3 = jax.random.normal(k1, (N3, C), dtype=jnp.float32)
    target3 = jax.random.randint(k2, (N3,), 0, C, dtype=jnp.int32)
    loss3 = jax.block_until_ready(dice_loss(inputs3, target3))
    ref3 = _dice_loss_ref(inputs3, target3)
    assert jnp.allclose(loss3, ref3, atol=1e-5, rtol=1e-5), (loss3, ref3)

    print("KERNEL_OK")
</pallas_src>

<mosaic_0001>
module attributes {stable_mosaic.version = 11 : i64} {
  func.func @_dice_loss_kernel(%arg0: i32, %arg1: memref<8x32xf32, #tpu.memory_space<vmem>>, %arg2: memref<8x1xi32, #tpu.memory_space<vmem>>, %arg3: memref<8x128xf32, #tpu.memory_space<vmem>>) attributes {dimension_semantics = [#tpu.dimension_semantics<parallel>], iteration_bounds = array<i64: 2>, scalar_prefetch = 0 : i64, scratch_operands = 0 : i64, tpu.core_type = #tpu.core_type<tc>, window_params = [{transform_indices = @transform_0, window_bounds = array<i64: 8, 32>}, {transform_indices = @transform_1, window_bounds = array<i64: 8, 1>}, {transform_indices = @transform_2, window_bounds = array<i64: 8, 128>}]} {
    %c0 = arith.constant 0 : index
    %c0_0 = arith.constant 0 : index
    %0 = vector.load %arg1[%c0, %c0_0] : memref<8x32xf32, #tpu.memory_space<vmem>>, vector<8x32xf32>
    %c0_1 = arith.constant 0 : index
    %c0_2 = arith.constant 0 : index
    %1 = vector.load %arg2[%c0_1, %c0_2] : memref<8x1xi32, #tpu.memory_space<vmem>>, vector<8x1xi32>
    %2 = tpu.iota {dimensions = array<i32: 0>} : vector<8x1xi32>
    %c8_i32 = arith.constant 8 : i32
    %3 = arith.muli %arg0, %c8_i32 : i32
    %4 = vector.broadcast %3 : i32 to vector<8x1xi32>
    %5 = arith.addi %2, %4 : vector<8x1xi32>
    %c16_i32 = arith.constant 16 : i32
    %6 = vector.broadcast %c16_i32 : i32 to vector<8x1xi32>
    %7 = arith.cmpi slt, %5, %6 : vector<8x1xi32>
    %8 = tpu.iota {dimensions = array<i32: 1>} : vector<8x32xi32>
    %cst = arith.constant dense<0xFF800000> : vector<8xf32>
    %9 = vector.multi_reduction <maximumf>, %0, %cst [1] : vector<8x32xf32> to vector<8xf32>
    %10 = vector.shape_cast %9 : vector<8xf32> to vector<8x1xf32>
    %11 = vector.broadcast %10 : vector<8x1xf32> to vector<8x32xf32>
    %12 = arith.subf %0, %11 : vector<8x32xf32>
    %13 = math.exp %12 : vector<8x32xf32>
    %cst_3 = arith.constant dense<0.000000e+00> : vector<8xf32>
    %14 = vector.multi_reduction <add>, %13, %cst_3 [1] : vector<8x32xf32> to vector<8xf32>
    %15 = vector.shape_cast %14 : vector<8xf32> to vector<8x1xf32>
    %16 = vector.broadcast %1 : vector<8x1xi32> to vector<8x32xi32>
    %17 = arith.cmpi eq, %8, %16 : vector<8x32xi32>
    %cst_4 = arith.constant 0xFF800000 : f32
    %18 = vector.broadcast %cst_4 : f32 to vector<8x32xf32>
    %19 = arith.select %17, %0, %18 : vector<8x32xi1>, vector<8x32xf32>
    %cst_5 = arith.constant dense<0xFF800000> : vector<8xf32>
    %20 = vector.multi_reduction <maximumf>, %19, %cst_5 [1] : vector<8x32xf32> to vector<8xf32>
    %21 = vector.shape_cast %20 : vector<8xf32> to vector<8x1xf32>
    %22 = arith.subf %21, %10 : vector<8x1xf32>
    %23 = math.exp %22 : vector<8x1xf32>
    %24 = arith.subf %15, %23 : vector<8x1xf32>
    %25 = arith.mulf %15, %15 : vector<8x1xf32>
    %26 = arith.mulf %24, %23 : vector<8x1xf32>
    %27 = arith.addf %26, %25 : vector<8x1xf32>
    %28 = tpu.reciprocal %27 : vector<8x1xf32> -> vector<8x1xf32>
    %29 = arith.mulf %25, %28 : vector<8x1xf32>
    %cst_6 = arith.constant 0.000000e+00 : f32
    %30 = vector.broadcast %cst_6 : f32 to vector<8x1xf32>
    %31 = arith.select %7, %29, %30 : vector<8x1xi1>, vector<8x1xf32>
    %32 = vector.shape_cast %31 : vector<8x1xf32> to vector<1x8x1xf32>
    %cst_7 = arith.constant dense<0.000000e+00> : vector<1xf32>
    %33 = vector.multi_reduction <add>, %32, %cst_7 [1, 2] : vector<1x8x1xf32> to vector<1xf32>
    %34 = vector.shape_cast %33 : vector<1xf32> to vector<1x1x1xf32>
    %35 = vector.extract %34[0, 0, 0] : f32 from vector<1x1x1xf32>
    %36 = vector.broadcast %35 : f32 to vector<8x128xf32>
    %c0_8 = arith.constant 0 : index
    %c0_9 = arith.constant 0 : index
    %37 = vector.load %arg3[%c0_8, %c0_9] : memref<8x128xf32, #tpu.memory_space<vmem>>, vector<8x128xf32>
    tpu.vector_store %arg3[%c0_8, %c0_9], %36 {strides = array<i32>} : memref<8x128xf32, #tpu.memory_space<vmem>>, vector<8x128xf32>,
    return
  }
  func.func @transform_0(%arg0: i32) -> (i32, i32) {
    %c0_i32 = arith.constant 0 : i32
    %c0_i32_0 = arith.constant 0 : i32
    return %arg0, %c0_i32 : i32, i32
  }
  func.func @transform_1(%arg0: i32) -> (i32, i32) {
    %c0_i32 = arith.constant 0 : i32
    %c0_i32_0 = arith.constant 0 : i32
    return %arg0, %c0_i32 : i32, i32
  }
  func.func @transform_2(%arg0: i32) -> (i32, i32) {
    %c0_i32 = arith.constant 0 : i32
    %c0_i32_0 = arith.constant 0 : i32
    return %arg0, %c0_i32 : i32, i32
  }
}

</mosaic_0001>

<llo_original>
// kernel: tpu_custom_call.1
$region0: #{tpu_custom_call.1}
  #allocation0 [shape = 'u32[]', space=smem, size = 0x4, offset = 0x4, fixed_abs, tag = 'smem constant byte address 0x4 - core index']
  #allocation1 [shape = 'u32[144,128]{1,0:T(1,128)}', space=vmem, size = 0x12000, scoped, tag = 'internal scratch']
  %s0 = inlined_call_operand.vmem [shape: f32[16,32], index: 0, kind: input, shape index: {}]
  %s1 = inlined_call_operand.vmem [shape: s32[16,1], index: 1, kind: input, shape index: {}]
  %s2 = inlined_call_operand.hbm [shape: f32[16,128], index: 2, kind: output, shape index: {}]
  %s3 = sld [smem:[#allocation0]]
  $region41: #{tpu_custom_call.1} parent=0
    _
  %s5 = ssub.s32 1, %s3
  %s6 = scalar_select 0, %s5, %s3
  $region1: #{tpu_custom_call.1} parent=0
    #allocation2 [shape = 'u8[8192]{0}', space=vmem, size = 0x2000, scoped, tag = 'output window, operand 0']
    #allocation3 [shape = 's32[2]{0}', space=sflag, size = 0x8, scoped, tag = 'scoped memory for tpu_custom_call.1']
    %7 = vsyncpa [#allocation3], 0
    %s8 = scalar_lea.sflag [#allocation3], 1
    %9 = vsyncpa %s8, 0
    loop: start=0, step=1, limit=4
    $region2: #{tpu_custom_call.1} parent=1 // loop_pre_header
      _
    $region3: #{tpu_custom_call.1} parent=1 // loop_header
      %s11 = sphi 0, %s15
      %p12 = scmp.ge.s32.totalorder %s11, 4
      %s21 = sphi 0, %s23
      %s24 = sphi 0, %s21
      %s25 = sphi 0, %s24
      %s41 = sphi 0, %s25
      %s47 = sphi 0, %s49
      %s50 = sphi 0, %s47
      %s51 = sphi 0, %s50
      %s67 = sphi 0, %s51
      %s73 = sphi 0, %s75
      %s76 = sphi 0, %s73
      %s77 = sphi 0, %s76
      %s93 = sphi 0, %s77
    $region4: #{tpu_custom_call.1} parent=1 // loop_header_branch
      %14 = sbr.rel (%p12) target = $region8
    $region5: #{tpu_custom_call.1} parent=1 // loop_body
      %s16 = ssub.s32 %s11, 1
      %s17 = ssub.s32 %s11, 2
      %s18 = sadd.s32 %s11, 1
      %s19 = ssub.s32 %s11, %s18
      %p20 = scmp.eq.s32.totalorder %s19, 0
      %s22 = sadd.s32 %s21, 1
      %s23 = scalar_select %p20, %s21, %s22
      %p26 = pneg %p20
      %p27 = scmp.eq.s32.totalorder %s11, 1
      %p28 = por %p26, %p27
      %p29 = scmp.ne.s32.totalorder %s21, %s24
      %p30 = scmp.eq.s32.totalorder %s11, 0
      %p31 = por %p29, %p30
      %p32 = scmp.ne.s32.totalorder %s21, %s24
      %p33 = scmp.eq.s32.totalorder %s16, 1
      %p34 = por %p32, %p33
      %p35 = scmp.ne.s32.totalorder %s24, %s25
      %p36 = scmp.eq.s32.totalorder %s16, 0
      %p37 = por %p35, %p36
      %p38 = scmp.ne.s32.totalorder %s24, %s25
      %p39 = scmp.eq.s32.totalorder %s17, 1
      %p40 = por %p38, %p39
      %p42 = scmp.ne.s32.totalorder %s25, %s41
      %p43 = scmp.eq.s32.totalorder %s17, 0
      %p44 = por %p42, %p43
      %s45 = ssub.s32 %s11, %s18
      %p46 = scmp.eq.s32.totalorder %s45, 0
      %s48 = sadd.s32 %s47, 1
      %s49 = scalar_select %p46, %s47, %s48
      %p52 = pneg %p46
      %p53 = scmp.eq.s32.totalorder %s11, 1
      %p54 = por %p52, %p53
      %p55 = scmp.ne.s32.totalorder %s47, %s50
      %p56 = scmp.eq.s32.totalorder %s11, 0
      %p57 = por %p55, %p56
      %p58 = scmp.ne.s32.totalorder %s47, %s50
      %p59 = scmp.eq.s32.totalorder %s16, 1
      %p60 = por %p58, %p59
      %p61 = scmp.ne.s32.totalorder %s50, %s51
      %p62 = scmp.eq.s32.totalorder %s16, 0
      %p63 = por %p61, %p62
      %p64 = scmp.ne.s32.totalorder %s50, %s51
      %p65 = scmp.eq.s32.totalorder %s17, 1
      %p66 = por %p64, %p65
      %p68 = scmp.ne.s32.totalorder %s51, %s67
      %p69 = scmp.eq.s32.totalorder %s17, 0
      %p70 = por %p68, %p69
      %s71 = ssub.s32 %s11, %s18
      %p72 = scmp.eq.s32.totalorder %s71, 0
      %s74 = sadd.s32 %s73, 1
      %s75 = scalar_select %p72, %s73, %s74
      %p78 = pneg %p72
      %p79 = scmp.eq.s32.totalorder %s11, 1
      %p80 = por %p78, %p79
      %p81 = scmp.ne.s32.totalorder %s73, %s76
      %p82 = scmp.eq.s32.totalorder %s11, 0
      %p83 = por %p81, %p82
      %p84 = scmp.ne.s32.totalorder %s73, %s76
      %p85 = scmp.eq.s32.totalorder %s16, 1
      %p86 = por %p84, %p85
      %p87 = scmp.ne.s32.totalorder %s76, %s77
      %p88 = scmp.eq.s32.totalorder %s16, 0
      %p89 = por %p87, %p88
      %p90 = scmp.ne.s32.totalorder %s76, %s77
      %p91 = scmp.eq.s32.totalorder %s17, 1
      %p92 = por %p90, %p91
      %p94 = scmp.ne.s32.totalorder %s77, %s93
      %p95 = scmp.eq.s32.totalorder %s17, 0
      %p96 = por %p94, %p95
      %p97 = scmp.le.s32.totalorder 1, %s11
      %p98 = scmp.lt.s32.totalorder %s11, 3
      %p99 = pnand %p97, %p98
      %p100 = pneg %p99
      // Predicated region
      $region9: #{tpu_custom_call.1} parent=5 // pred_check
        _
      $region10: #{tpu_custom_call.1} parent=5 // pred_check_branch
        %102 = sbr.rel (%p99) target = $region12
      $region11: #{tpu_custom_call.1} parent=5 // pred_region
        %s103 = ssub.s32 %s11, 1
      $region12: #{tpu_custom_call.1} parent=5 // pred_fallthru
        _
      %p104 = scmp.lt.s32.totalorder %s11, 2
      // Predicated region
      $region13: #{tpu_custom_call.1} parent=5 // pred_check
        %p105 = pneg %p104
      $region14: #{tpu_custom_call.1} parent=5 // pred_check_branch
        %107 = sbr.rel (%p105) target = $region16
      $region15: #{tpu_custom_call.1} parent=5 // pred_region
        // Predicated region
        $region17: #{tpu_custom_call.1} parent=15 // pred_check
          %p108 = pneg %p31
        $region18: #{tpu_custom_call.1} parent=15 // pred_check_branch
          %110 = sbr.rel (%p108) target = $region20
        $region19: #{tpu_custom_call.1} parent=15 // pred_region
          %p111 = scmp.lt.s32.totalorder %s11, 1
          %s112 = scalar_select %p111, %s11, 1
          %s113 = smul.addr %s112, 8
          %s114 = scalar_lea.vmem %s0, %s113
        $region20: #{tpu_custom_call.1} parent=15 // pred_fallthru
          _
        // Predicated region
        $region21: #{tpu_custom_call.1} parent=15 // pred_check
          %p115 = pneg %p57
        $region22: #{tpu_custom_call.1} parent=15 // pred_check_branch
          %117 = sbr.rel (%p115) target = $region24
        $region23: #{tpu_custom_call.1} parent=15 // pred_region
          %p118 = scmp.lt.s32.totalorder %s11, 1
          %s119 = scalar_select %p118, %s11, 1
          %s120 = smul.addr %s119, 8
          %s121 = scalar_lea.vmem %s1, %s120
        $region24: #{tpu_custom_call.1} parent=15 // pred_fallthru
          _
      $region16: #{tpu_custom_call.1} parent=5 // pred_fallthru
        _
      %p122 = scmp.le.s32.totalorder 1, %s11
      %p123 = scmp.lt.s32.totalorder %s11, 3
      %p124 = pnand %p122, %p123
      %p125 = pneg %p124
      // Predicated region
      $region25: #{tpu_custom_call.1} parent=5 // pred_check
        _
      $region26: #{tpu_custom_call.1} parent=5 // pred_check_branch
        %127 = sbr.rel (%p124) target = $region28
      $region27: #{tpu_custom_call.1} parent=5 // pred_region
        %s128 = ssub.s32 %s11, 1
        %p129 = scmp.lt.s32.totalorder %s16, 1
        %s130 = scalar_select %p129, %s16, 1
        %s131 = smul.addr %s130, 8
        %s132 = scalar_lea.vmem %s0, %s131
        %p133 = pneg %p37
        %p134 = pneg %p34
        %p135 = scmp.lt.s32.totalorder %s16, 1
        %s136 = scalar_select %p135, %s16, 1
        %s137 = smul.addr %s136, 8
        %s138 = scalar_lea.vmem %s1, %s137
        %p139 = pneg %p63
        %p140 = pneg %p60
        %p141 = pneg %p89
        %p142 = pneg %p86
        %s143 = sand.u32 %s76, 1
        %s144 = scalar_lea.sflag [#allocation3], %s143
        %s145 = sand.u32 %s76, 1
        %s146 = smul.addr %s145, 8
        %s147 = scalar_lea.vmem [#allocation2], %s146
        %p148 = scmp.lt.s32.totalorder %s16, 1
        %s149 = scalar_select %p148, %s16, 1
        %s150 = smul.addr %s149, 8
        %s151 = scalar_lea.vmem %s0, %s150
        %p152 = scmp.lt.s32.totalorder %s16, 1
        %s153 = scalar_select %p152, %s16, 1
        %s154 = smul.addr %s153, 8
        %s155 = scalar_lea.vmem %s1, %s154
        %v156 = vld [vmem:[%s151] sm:$0xff]
        %v157 = vld [vmem:[%s155] sm:$0xff]
        %v158 = vlaneseq
        %v159 = vshrl.u32 %v158, 7
        %s160 = smul.u32 %s16, 8
        %v161 = vstv %s160
        %v162 = vadd.s32 %v159, %v161
        %vm163 = vcmp.lt.s32.totalorder %v162, 16
        %v164 = vlaneseq
        %v165 = vand.u32 %v164, 127
        %vm166 = vcmask 261120
        %v167 = vsel %vm166, %v156, -inf
        %168 = vmax.xlane.f32.xlu0 %v167
        %v169 = vpop.xlane.xlu0 %168
        %v170 = vsub.f32 %v156, %v169
        %v171 = vmul.f32 %v170, 1.442695
        %v172 = vpow.pop %v171
        %v173 = vsel %vm166, %v172, 0.0
        %174 = vadd.xlane.f32.xlu0 %v173
        %v175 = vpop.xlane.xlu0 %174
        %176 = vset.pattern.permute.xlu0 0
        %177 = vperm.xlu0 %176, %v157
        %v178 = vpop.permute.xlu0 %177
        %vm179 = vcmp.eq.s32.totalorder %v165, %v178
        %v180 = vsel %vm179, %v156, -inf
        %v181 = vsel %vm166, %v180, -inf
        %182 = vmax.xlane.f32.xlu0 %v181
        %v183 = vpop.xlane.xlu0 %182
        %v184 = vsub.f32 %v183, %v169
        %v185 = vmul.f32 %v184, 1.442695
        %v186 = vpow.pop %v185
        %v187 = vsub.f32 %v175, %v186
        %v188 = vmul.f32 %v175, %v175
        %v189 = vmul.f32 %v187, %v186
        %v190 = vadd.f32 %v189, %v188
        %v191 = vrcp.pop %v190
        %v192 = vmul.f32 %v188, %v191
        %v193 = vsel %vm163, %v192, 0.0
        %vm194 = vcmask 7168
        %v195 = vsel %vm194, %v193, 0.0
        %196 = vadd.xlane.f32.xlu0 %v195
        %v197 = vpop.xlane.xlu0 %196
        %v198 = vrot.slane %v197, 4
        %v199 = vadd.f32 %v197, %v198
        %v200 = vrot.slane %v199, 2
        %v201 = vadd.f32 %v199, %v200
        %v202 = vrot.slane %v201, 1
        %v203 = vadd.f32 %v201, %v202
        %s204 = vtos %v203
        %v205 = vstv %s204
        %206 = vst [vmem:[%s147] sm:$0xff] %v205
        %s207 = sand.u32 %s76, 1
        %s208 = scalar_lea.sflag [#allocation3], %s207
        %s209 = sand.u32 %s76, 1
        %s210 = smul.addr %s209, 8
        %s211 = scalar_lea.vmem [#allocation2], %s210
        // Predicated region
        $region29: #{tpu_custom_call.1} parent=27 // pred_check
          %p212 = pneg %p86
        $region30: #{tpu_custom_call.1} parent=27 // pred_check_branch
          %214 = sbr.rel (%p212) target = $region32
        $region31: #{tpu_custom_call.1} parent=27 // pred_region
          %s216 = ssub.s32 128, 128
          %217 = vsyncadd %s208, %s216
          %s218 = smul.addr %s16, 128
          %s219 = scalar_lea.hbm %s2, %s218
          %s221 = sshll.u32 %s211, 4
          %s222 = int_to_ptr.vmem [resolvable:$true] %s221
          %224 = dma.vmem_to_hbm [thread:$0]  %s222, 128, %s219, %s208
        $region32: #{tpu_custom_call.1} parent=27 // pred_fallthru
          _
      $region28: #{tpu_custom_call.1} parent=5 // pred_fallthru
        _
      %p225 = scmp.le.s32.totalorder 2, %s11
      // Predicated region
      $region33: #{tpu_custom_call.1} parent=5 // pred_check
        %p226 = pneg %p225
      $region34: #{tpu_custom_call.1} parent=5 // pred_check_branch
        %228 = sbr.rel (%p226) target = $region36
      $region35: #{tpu_custom_call.1} parent=5 // pred_region
        %s229 = ssub.s32 %s11, 2
        // Predicated region
        $region37: #{tpu_custom_call.1} parent=35 // pred_check
          %p230 = pneg %p92
        $region38: #{tpu_custom_call.1} parent=35 // pred_check_branch
          %232 = sbr.rel (%p230) target = $region40
        $region39: #{tpu_custom_call.1} parent=35 // pred_region
          %s233 = sand.u32 %s77, 1
          %s234 = scalar_lea.sflag [#allocation3], %s233
          %s235 = sand.u32 %s77, 1
          %s236 = smul.addr %s235, 8
          %s237 = scalar_lea.vmem [#allocation2], %s236
          %238 = dma.done %s234, 128
        $region40: #{tpu_custom_call.1} parent=35 // pred_fallthru
          _
      $region36: #{tpu_custom_call.1} parent=5 // pred_fallthru
        _
    $region6: #{tpu_custom_call.1} parent=1 // loop_footer
      %s15 = sadd.s32 1, %s11
    $region7: #{tpu_custom_call.1} parent=1 // loop_footer_branch
      %10 = sbr.rel target = $region3
    $region8: #{tpu_custom_call.1} parent=1 // loop_exit
      _
    %239 = vsyncpa [#allocation3], 1
    %s240 = scalar_lea.sflag [#allocation3], 1
    %241 = vsyncpa %s240, 1

</llo_original>
